<compile_context>
chip_gen: v5e
topology: v5e:2x2
jax: 0.10.0
libtpu: 0.0.40
codegen_flags: <defaults>
</compile_context>

<pallas_src>
import functools

import jax
import jax.numpy as jnp
from jax.experimental import pallas as pl
from jax.experimental.pallas import tpu as pltpu

_LANES = 128
_MAX_BLOCK_ROWS = 2048   # 2048 x 128 x 4B = 1 MiB per f32 input block
_NEG_BIG = -1e30         # softplus(_NEG_BIG) == 0 with the stable formulation


def _cdiv(a, b):
    return (a + b - 1) // b


def _round_up(a, b):
    return _cdiv(a, b) * b


def _dlogistic_loss_kernel(x_ref, out_ref, acc_ref, *,
                           n_elements, block_rows, steps_per_slice, apply_mask):
    c = pl.program_id(0)   # slice axis (one per TensorCore on v7x) -- "parallel"
    i = pl.program_id(1)   # reduction axis                         -- "arbitrary"

    @pl.when(i == 0)
    def _init():
        acc_ref[...] = jnp.zeros_like(acc_ref)

    x = x_ref[...].astype(jnp.float32)

    if apply_mask:
        # Mask padded lanes / partial blocks / phantom (clamped) blocks.
        blk = c * steps_per_slice + i
        start = blk * (block_rows * _LANES)
        row_ids = jax.lax.broadcasted_iota(jnp.int32, (block_rows, _LANES), 0)
        lane_ids = jax.lax.broadcasted_iota(jnp.int32, (block_rows, _LANES), 1)
        elem_ids = start + row_ids * _LANES + lane_ids
        x = jnp.where(elem_ids < n_elements, x, jnp.float32(_NEG_BIG))

    # Numerically stable softplus: log(1+exp(x)) = max(x,0) + log1p(exp(-|x|))
    sp = jnp.maximum(x, 0.0) + jnp.log1p(jnp.exp(-jnp.abs(x)))

    # Full-width accumulator: pure VPU adds in the hot loop.
    acc_ref[...] = acc_ref[...] + sp

    @pl.when(i == pl.num_programs(1) - 1)
    def _finalize():
        # Single sublane-group reduce down to one (8,128) tile per slice.
        out_ref[...] = jnp.sum(acc_ref[...].reshape(-1, 8, _LANES), axis=0)


def dlogistic_loss(fake_pred):
    """Pallas TPU implementation of DLogisticLoss.forward."""
    n = fake_pred.size
    if n == 0:
        return jnp.float32(jnp.nan)  # torch: mean of empty tensor is nan

    flat = fake_pred.reshape(-1)

    # Reshape to a lane-dense (rows, 128) slab; pad only if n % 128 != 0.
    rows = _cdiv(n, _LANES)
    padded = rows * _LANES
    if padded != n:
        flat = jnp.pad(flat, (0, padded - n))
    x2d = flat.reshape(rows, _LANES)

    # Sublane granule depends on dtype packing (f32: 8, bf16: 16, 8-bit: 32).
    itemsize = jnp.dtype(fake_pred.dtype).itemsize
    granule = {4: 8, 2: 16}.get(itemsize, 32)
    block_rows = min(_MAX_BLOCK_ROWS, _round_up(rows, granule))
    total_blocks = _cdiv(rows, block_rows)

    # Split the reduction across 2 slices so v7x can use both TensorCores.
    num_slices = 2 if total_blocks >= 2 else 1
    steps_per_slice = _cdiv(total_blocks, num_slices)

    covered = num_slices * steps_per_slice * block_rows * _LANES
    apply_mask = covered != n  # exact coverage => masking statically elided

    def in_index_map(c, i):
        # Clamp phantom steps (odd block counts) to the last real block;
        # their contribution is fully masked in-kernel.
        return (jnp.minimum(c * steps_per_slice + i, total_blocks - 1), 0)

    kernel = functools.partial(
        _dlogistic_loss_kernel,
        n_elements=n,
        block_rows=block_rows,
        steps_per_slice=steps_per_slice,
        apply_mask=apply_mask,
    )

    partials = pl.pallas_call(
        kernel,
        out_shape=jax.ShapeDtypeStruct((num_slices * 8, _LANES), jnp.float32),
        grid_spec=pltpu.PrefetchScalarGridSpec(
            num_scalar_prefetch=0,
            grid=(num_slices, steps_per_slice),
            in_specs=[pl.BlockSpec((block_rows, _LANES), in_index_map)],
            out_specs=pl.BlockSpec((8, _LANES), lambda c, i: (c, 0)),
            scratch_shapes=[pltpu.VMEM((block_rows, _LANES), jnp.float32)],
        ),
        compiler_params=pltpu.CompilerParams(
            dimension_semantics=("parallel", "arbitrary"),
        ),
    )(x2d)

    # Tiny final cross-lane reduce + scale + negate in XLA.
    return -(jnp.sum(partials) / jnp.float32(n))


def _reference(fake_pred):
    x = fake_pred.astype(jnp.float32)
    return -jnp.mean(jax.nn.softplus(x))


if __name__ == "__main__":
    key = jax.random.PRNGKey(0)

    # Primary example: patch-GAN-style discriminator logits, NCHW.
    fake_pred = jax.random.normal(key, (2, 4, 16, 16), dtype=jnp.float32) * 3.0
    loss = jax.block_until_ready(jax.jit(dlogistic_loss)(fake_pred))
    ref = _reference(fake_pred)
    assert jnp.allclose(loss, ref, rtol=2e-5, atol=1e-6), (loss, ref)

    # Extra check: ragged size (exercises padding + in-kernel tail mask).
    k1, k2 = jax.random.split(key)
    ragged = jax.random.normal(k1, (3, 5, 17, 19), dtype=jnp.float32) * 2.0
    loss_r = jax.block_until_ready(jax.jit(dlogistic_loss)(ragged))
    assert jnp.allclose(loss_r, _reference(ragged), rtol=2e-5, atol=1e-6)

    # Extra check: multi-block / two-slice path (partial last block + clamp).
    big = jax.random.normal(k2, (2, 8, 128, 144), dtype=jnp.float32)
    loss_b = jax.block_until_ready(jax.jit(dlogistic_loss)(big))
    assert jnp.allclose(loss_b, _reference(big), rtol=2e-5, atol=1e-6)

    print("KERNEL_OK")
</pallas_src>

<mosaic_0001>
module attributes {stable_mosaic.version = 11 : i64} {
  func.func @_dlogistic_loss_kernel(%arg0: i32, %arg1: i32, %arg2: memref<16x128xf32, #tpu.memory_space<vmem>>, %arg3: memref<8x128xf32, #tpu.memory_space<vmem>>, %arg4: memref<16x128xf32, #tpu.memory_space<vmem>>) attributes {dimension_semantics = [#tpu.dimension_semantics<parallel>, #tpu.dimension_semantics<arbitrary>], iteration_bounds = array<i64: 1, 1>, scalar_prefetch = 0 : i64, scratch_operands = 1 : i64, tpu.core_type = #tpu.core_type<tc>, window_params = [{transform_indices = @transform_0, window_bounds = array<i64: 16, 128>}, {transform_indices = @transform_1, window_bounds = array<i64: 8, 128>}]} {
    %c0_i32 = arith.constant 0 : i32
    %0 = arith.cmpi eq, %arg1, %c0_i32 : i32
    %1 = arith.extui %0 : i1 to i32
    %c0_i32_0 = arith.constant 0 : i32
    %2 = arith.cmpi ne, %1, %c0_i32_0 : i32
    scf.if %2 {
      %cst_9 = arith.constant 0.000000e+00 : f32
      %18 = vector.broadcast %cst_9 : f32 to vector<16x128xf32>
      %c0_10 = arith.constant 0 : index
      %c0_11 = arith.constant 0 : index
      %19 = vector.load %arg4[%c0_10, %c0_11] : memref<16x128xf32, #tpu.memory_space<vmem>>, vector<16x128xf32>
      tpu.vector_store %arg4[%c0_10, %c0_11], %18 {strides = array<i32>} : memref<16x128xf32, #tpu.memory_space<vmem>>, vector<16x128xf32>,
    } else {
    }
    %c0 = arith.constant 0 : index
    %c0_1 = arith.constant 0 : index
    %3 = vector.load %arg2[%c0, %c0_1] : memref<16x128xf32, #tpu.memory_space<vmem>>, vector<16x128xf32>
    %cst = arith.constant 0.000000e+00 : f32
    %4 = vector.broadcast %cst : f32 to vector<16x128xf32>
    %5 = arith.maximumf %3, %4 : vector<16x128xf32>
    %6 = math.absf %3 : vector<16x128xf32>
    %cst_2 = arith.constant 0.000000e+00 : f32
    %7 = vector.broadcast %cst_2 : f32 to vector<16x128xf32>
    %8 = arith.subf %7, %6 : vector<16x128xf32>
    %9 = math.exp %8 : vector<16x128xf32>
    %10 = math.log1p %9 : vector<16x128xf32>
    %11 = arith.addf %5, %10 : vector<16x128xf32>
    %c0_3 = arith.constant 0 : index
    %c0_4 = arith.constant 0 : index
    %12 = vector.load %arg4[%c0_3, %c0_4] : memref<16x128xf32, #tpu.memory_space<vmem>>, vector<16x128xf32>
    %13 = arith.addf %12, %11 : vector<16x128xf32>
    %c0_5 = arith.constant 0 : index
    %c0_6 = arith.constant 0 : index
    %14 = vector.load %arg4[%c0_5, %c0_6] : memref<16x128xf32, #tpu.memory_space<vmem>>, vector<16x128xf32>
    tpu.vector_store %arg4[%c0_5, %c0_6], %13 {strides = array<i32>} : memref<16x128xf32, #tpu.memory_space<vmem>>, vector<16x128xf32>,
    %c0_i32_7 = arith.constant 0 : i32
    %15 = arith.cmpi eq, %arg1, %c0_i32_7 : i32
    %16 = arith.extui %15 : i1 to i32
    %c0_i32_8 = arith.constant 0 : i32
    %17 = arith.cmpi ne, %16, %c0_i32_8 : i32
    scf.if %17 {
      %c0_9 = arith.constant 0 : index
      %c0_10 = arith.constant 0 : index
      %18 = vector.load %arg4[%c0_9, %c0_10] : memref<16x128xf32, #tpu.memory_space<vmem>>, vector<16x128xf32>
      %19 = vector.shape_cast %18 : vector<16x128xf32> to vector<2x8x128xf32>
      %cst_11 = arith.constant dense<0.000000e+00> : vector<8x128xf32>
      %20 = vector.multi_reduction <add>, %19, %cst_11 [0] : vector<2x8x128xf32> to vector<8x128xf32>
      %c0_12 = arith.constant 0 : index
      %c0_13 = arith.constant 0 : index
      %21 = vector.load %arg3[%c0_12, %c0_13] : memref<8x128xf32, #tpu.memory_space<vmem>>, vector<8x128xf32>
      tpu.vector_store %arg3[%c0_12, %c0_13], %20 {strides = array<i32>} : memref<8x128xf32, #tpu.memory_space<vmem>>, vector<8x128xf32>,
    } else {
    }
    return
  }
  func.func @transform_0(%arg0: i32, %arg1: i32) -> (i32, i32) {
    %c1_i32 = arith.constant 1 : i32
    %0 = arith.muli %arg0, %c1_i32 : i32
    %1 = arith.addi %0, %arg1 : i32
    %c0_i32 = arith.constant 0 : i32
    %2 = arith.minsi %1, %c0_i32 : i32
    %c0_i32_0 = arith.constant 0 : i32
    %c0_i32_1 = arith.constant 0 : i32
    return %2, %c0_i32_0 : i32, i32
  }
  func.func @transform_1(%arg0: i32, %arg1: i32) -> (i32, i32) {
    %c0_i32 = arith.constant 0 : i32
    %c0_i32_0 = arith.constant 0 : i32
    return %arg0, %c0_i32 : i32, i32
  }
}

</mosaic_0001>

<llo_original>
// kernel: dlogistic_loss.1
$region0: #{dlogistic_loss.1}
  #allocation0 [shape = 'u32[]', space=smem, size = 0x4, offset = 0x4, fixed_abs, tag = 'smem constant byte address 0x4 - core index']
  #allocation1 [shape = 'u32[72,128]{1,0:T(1,128)}', space=vmem, size = 0x9000, scoped, tag = 'internal scratch']
  #allocation2 [shape = 'f32[16,128]{1,0:T(8,128)}', space=vmem, size = 0x2000, scoped, tag = 'scratch operand']
  %s0 = inlined_call_operand.vmem [shape: f32[16,128], index: 0, kind: input, shape index: {}]
  %s1 = inlined_call_operand.vmem [shape: f32[8,128], index: 1, kind: output, shape index: {}]
  %s2 = sld [smem:[#allocation0]]
  $region22: #{dlogistic_loss.1} parent=0
    _
  %s4 = ssub.s32 1, %s2
  %s5 = scalar_select 0, %s4, %s2
  // Predicated region
  $region2: #{dlogistic_loss.1} parent=0 // pred_check
    _
  $region3: #{dlogistic_loss.1} parent=0 // pred_check_branch
    %7 = sbr.rel (0) target = $region5
  $region4: #{dlogistic_loss.1} parent=0 // pred_region
    %s8 = sadd.s32 0, 0
    %p9 = scmp.lt.s32.totalorder %s8, 0
    %s10 = scalar_select %p9, %s8, 0
    %s11 = smul.u32 2, %s10
    %p12 = scmp.lt.s32.totalorder %s11, 1
    %s13 = scalar_select %p12, %s11, 1
    %s14 = smul.addr %s13, 8
    %s15 = scalar_lea.vmem %s0, %s14
    %s16 = sadd.s32 0, 0
    %p17 = scmp.lt.s32.totalorder %s16, 0
    %s18 = scalar_select %p17, %s16, 0
    %s19 = smul.u32 2, %s18
  $region5: #{dlogistic_loss.1} parent=0 // pred_fallthru
    _
  %s20 = sadd.s32 0, 0
  %p21 = scmp.lt.s32.totalorder %s20, 0
  %s22 = scalar_select %p21, %s20, 0
  %s23 = smul.u32 2, %s22
  %p24 = scmp.lt.s32.totalorder %s23, 1
  %s25 = scalar_select %p24, %s23, 1
  %s26 = smul.addr %s25, 8
  %s27 = scalar_lea.vmem %s0, %s26
  %s28 = sadd.s32 0, 0
  %p29 = scmp.lt.s32.totalorder %s28, 0
  %s30 = scalar_select %p29, %s28, 0
  %s31 = smul.u32 2, %s30
  %p32 = scmp.lt.s32.totalorder %s31, 1
  %s33 = scalar_select %p32, %s31, 1
  %s34 = smul.addr %s33, 8
  %s35 = scalar_lea.vmem %s0, %s34
  %s36 = sadd.s32 0, 0
  %p37 = scmp.lt.s32.totalorder %s36, 0
  %s38 = scalar_select %p37, %s36, 0
  %s39 = smul.u32 2, %s38
  %p40 = scmp.eq.s32.totalorder 0, 0
  // Predicated region
  $region6: #{dlogistic_loss.1} parent=0 // pred_check
    %p41 = pneg %p40
  $region7: #{dlogistic_loss.1} parent=0 // pred_check_branch
    %43 = sbr.rel (%p41) target = $region9
  $region8: #{dlogistic_loss.1} parent=0 // pred_region
    %44 = vst [vmem:[#allocation2] sm:$0xff] 0.0
    %45 = vst [vmem:[#allocation2 + $0x8] sm:$0xff] 0.0
  $region9: #{dlogistic_loss.1} parent=0 // pred_fallthru
    _
  %v46 = vld [vmem:[%s35] sm:$0xff]
  %v47 = vld [vmem:[%s35 + $0x8] sm:$0xff]
  %v48 = vmax.f32 %v46, 0.0
  %v49 = vmax.f32 %v47, 0.0
  %v50 = vand.u32 2147483647, %v46
  %v51 = vand.u32 2147483647, %v47
  %v52 = vsub.f32 0.0, %v50
  %v53 = vsub.f32 0.0, %v51
  %v54 = vmul.f32 %v52, 1.442695
  %v55 = vpow.pop %v54
  %v56 = vmul.f32 %v53, 1.442695
  %v57 = vpow.pop %v56
  %v58 = vadd.f32 %v55, 1.0
  %v59 = vlog2.pop %v58
  %v60 = vmul.f32 %v59, 0.6931472
  %v61 = vmul.f32 -0.5, %v55
  %v62 = vadd.f32 %v61, 1.0
  %v63 = vmul.f32 %v62, %v55
  %v64 = vand.u32 2147483647, %v55
  %vm65 = vcmp.lt.f32.partialorder %v64, 0.0004427343
  %v66 = vsel %vm65, %v63, %v60
  %v67 = vadd.f32 %v57, 1.0
  %v68 = vlog2.pop %v67
  %v69 = vmul.f32 %v68, 0.6931472
  %v70 = vmul.f32 -0.5, %v57
  %v71 = vadd.f32 %v70, 1.0
  %v72 = vmul.f32 %v71, %v57
  %v73 = vand.u32 2147483647, %v57
  %vm74 = vcmp.lt.f32.partialorder %v73, 0.0004427343
  %v75 = vsel %vm74, %v72, %v69
  %v76 = vadd.f32 %v48, %v66
  %v77 = vadd.f32 %v49, %v75
  %v78 = vld [vmem:[#allocation2] sm:$0xff]
  %v79 = vld [vmem:[#allocation2 + $0x8] sm:$0xff]
  %v80 = vadd.f32 %v78, %v76
  %v81 = vadd.f32 %v79, %v77
  %82 = vst [vmem:[#allocation2] sm:$0xff] %v80
  %83 = vst [vmem:[#allocation2 + $0x8] sm:$0xff] %v81
  // Predicated region
  $region10: #{dlogistic_loss.1} parent=0 // pred_check
    %p84 = pneg %p40
  $region11: #{dlogistic_loss.1} parent=0 // pred_check_branch
    %86 = sbr.rel (%p84) target = $region13
  $region12: #{dlogistic_loss.1} parent=0 // pred_region
    %v87 = vld [vmem:[#allocation2] sm:$0xff]
    %v88 = vld [vmem:[#allocation2 + $0x8] sm:$0xff]
    %v89 = vadd.f32 %v87, %v88
    %90 = vst [vmem:[%s1] sm:$0xff] %v89
  $region13: #{dlogistic_loss.1} parent=0 // pred_fallthru
    _
  // Predicated region
  $region14: #{dlogistic_loss.1} parent=0 // pred_check
    _
  $region15: #{dlogistic_loss.1} parent=0 // pred_check_branch
    %92 = sbr.rel (0) target = $region17
  $region16: #{dlogistic_loss.1} parent=0 // pred_region
    _
  $region17: #{dlogistic_loss.1} parent=0 // pred_fallthru
    _
  // Predicated region
  $region18: #{dlogistic_loss.1} parent=0 // pred_check
    _
  $region19: #{dlogistic_loss.1} parent=0 // pred_check_branch
    %94 = sbr.rel (0) target = $region21
  $region20: #{dlogistic_loss.1} parent=0 // pred_region
    _
  $region21: #{dlogistic_loss.1} parent=0 // pred_fallthru
    _

</llo_original>
